<compile_context>
chip_gen: v6e
topology: v6e:2x2x1
jax: 0.10.0
libtpu: 0.0.40
codegen_flags: <defaults>
</compile_context>

<pallas_src>
import functools

import jax
import jax.numpy as jnp
from jax import lax
from jax.experimental import pallas as pl
from jax.experimental.pallas import tpu as pltpu

_LANE = 128


def _round_up(x, m):
    return ((x + m - 1) // m) * m


# ---------------------------------------------------------------------------
# Pallas kernel: full Actor.forward hot path
#   trunk (2 matmuls + ReLU) -> split head (2 lane-aligned matmuls)
#   -> tanh/rescale log_std -> reparameterized sample pi = mu + noise*std
#   -> gaussian_logprob (masked to real action lanes) -> squash
# ---------------------------------------------------------------------------
def _actor_kernel(obs_ref, noise_ref, w1_ref, b1_ref, w2_ref, b2_ref,
                  wmu_ref, bmu_ref, wls_ref, bls_ref,
                  mu_ref, pi_ref, log_pi_ref, log_std_ref,
                  *, act_dim, log_std_min, log_std_max):
    x = obs_ref[...]                                           # (TB, D) f32

    def mm(a, w_ref):
        # Matmul operands in the weight dtype (f32 or bf16), f32 accumulate.
        return jnp.dot(a.astype(w_ref.dtype), w_ref[...],
                       preferred_element_type=jnp.float32)

    # trunk: Linear -> ReLU -> Linear -> ReLU
    h1 = jnp.maximum(mm(x, w1_ref) + b1_ref[...], 0.0)
    h2 = jnp.maximum(mm(h1, w2_ref) + b2_ref[...], 0.0)

    # split head: two lane-aligned matmuls (replaces fused (H,2A) + chunk slice)
    mu = mm(h2, wmu_ref) + bmu_ref[...]                        # (TB, A_pad)
    log_std_raw = mm(h2, wls_ref) + bls_ref[...]               # (TB, A_pad)

    # log_std = tanh(log_std); rescale into [log_std_min, log_std_max]
    log_std = jnp.tanh(log_std_raw)
    log_std = log_std_min + 0.5 * (log_std_max - log_std_min) * (log_std + 1.0)

    # reparameterized sample
    std = jnp.exp(log_std)
    noise = noise_ref[...]
    pi = mu + noise * std

    # Only the first act_dim lanes are real action dims; the rest is zero-padding.
    lane_idx = lax.broadcasted_iota(jnp.int32, mu.shape, 1)
    valid = lane_idx < act_dim

    # gaussian_logprob(noise, log_std) over the real action lanes only
    residual = jnp.sum(jnp.where(valid, -0.5 * noise * noise - log_std, 0.0),
                       axis=-1, keepdims=True)
    log_pi = residual - 0.5 * jnp.log(2.0 * jnp.pi) * act_dim

    # squash(mu, pi, log_pi)
    mu_t = jnp.tanh(mu)
    pi_t = jnp.tanh(pi)
    correction = jnp.log(jnp.maximum(1.0 - pi_t * pi_t, 0.0) + 1e-6)
    log_pi = log_pi - jnp.sum(jnp.where(valid, correction, 0.0),
                              axis=-1, keepdims=True)

    mu_ref[...] = mu_t
    pi_ref[...] = pi_t
    # lane-dense store of the per-row scalar (broadcast across 128 lanes)
    log_pi_ref[...] = jnp.broadcast_to(log_pi, log_pi_ref.shape)
    log_std_ref[...] = log_std


# ---------------------------------------------------------------------------
# Wrapper: pads batch/action lanes, builds the batch grid, slices valid outputs.
# ---------------------------------------------------------------------------
def actor_forward(obs, params, noise, *, log_std_min, log_std_max,
                  matmul_dtype=jnp.float32, block_batch=128):
    w1, b1, w2, b2, wmu, bmu, wls, bls = params
    batch, input_dim = obs.shape
    hidden_dim = w1.shape[1]
    a_pad = wmu.shape[1]               # lane-padded action dim (multiple of 128)
    act_dim = noise.shape[1]           # true action dim

    # Batch tiling: TB multiple of 8, capped; pad batch to a multiple of TB.
    tb = min(block_batch, _round_up(batch, 8))
    b_pad = _round_up(batch, tb)

    obs_p = jnp.pad(obs.astype(jnp.float32), ((0, b_pad - batch), (0, 0)))
    noise_p = jnp.pad(noise.astype(jnp.float32),
                      ((0, b_pad - batch), (0, a_pad - act_dim)))

    # Matmul operands in matmul_dtype (bf16 on v6e/v7x halves weight DMA);
    # biases and all elementwise math stay f32.
    w1c, w2c, wmuc, wlsc = (w.astype(matmul_dtype) for w in (w1, w2, wmu, wls))

    kernel = functools.partial(
        _actor_kernel, act_dim=act_dim,
        log_std_min=float(log_std_min), log_std_max=float(log_std_max))

    grid = (b_pad // tb,)
    batch_map = lambda i: (i, 0)
    const_map = lambda i: (0, 0)       # weights/biases stay resident in VMEM

    in_specs = [
        pl.BlockSpec((tb, input_dim), batch_map),      # obs
        pl.BlockSpec((tb, a_pad), batch_map),          # noise
        pl.BlockSpec(w1c.shape, const_map),
        pl.BlockSpec(b1.shape, const_map),
        pl.BlockSpec(w2c.shape, const_map),
        pl.BlockSpec(b2.shape, const_map),
        pl.BlockSpec(wmuc.shape, const_map),
        pl.BlockSpec(bmu.shape, const_map),
        pl.BlockSpec(wlsc.shape, const_map),
        pl.BlockSpec(bls.shape, const_map),
    ]
    out_specs = (
        pl.BlockSpec((tb, a_pad), batch_map),          # mu
        pl.BlockSpec((tb, a_pad), batch_map),          # pi
        pl.BlockSpec((tb, _LANE), batch_map),          # log_pi (lane-dense)
        pl.BlockSpec((tb, a_pad), batch_map),          # log_std
    )
    out_shapes = (
        jax.ShapeDtypeStruct((b_pad, a_pad), jnp.float32),
        jax.ShapeDtypeStruct((b_pad, a_pad), jnp.float32),
        jax.ShapeDtypeStruct((b_pad, _LANE), jnp.float32),
        jax.ShapeDtypeStruct((b_pad, a_pad), jnp.float32),
    )

    # Advisory cost estimate so XLA can schedule this call against other work.
    w_itemsize = jnp.dtype(matmul_dtype).itemsize
    flops = 2 * b_pad * (input_dim * hidden_dim + hidden_dim * hidden_dim
                         + 2 * hidden_dim * a_pad)
    transcendentals = 5 * b_pad * a_pad                # 3x tanh + exp + log
    bytes_accessed = (
        4 * (obs_p.size + noise_p.size)
        + w_itemsize * (w1c.size + w2c.size + wmuc.size + wlsc.size)
        + 4 * (b1.size + b2.size + bmu.size + bls.size)
        + 4 * (3 * b_pad * a_pad + b_pad * _LANE))
    cost = pl.CostEstimate(flops=int(flops),
                           transcendentals=int(transcendentals),
                           bytes_accessed=int(bytes_accessed))

    mu, pi, log_pi, log_std = pl.pallas_call(
        kernel,
        out_shape=out_shapes,
        grid=grid,
        in_specs=in_specs,
        out_specs=out_specs,
        compiler_params=pltpu.CompilerParams(
            dimension_semantics=("parallel",),
            vmem_limit_bytes=32 * 1024 * 1024),
        cost_estimate=cost,
    )(obs_p, noise_p, w1c, b1, w2c, b2, wmuc, bmu, wlsc, bls)

    return (mu[:batch, :act_dim], pi[:batch, :act_dim],
            log_pi[:batch, :1], log_std[:batch, :act_dim])


# ---------------------------------------------------------------------------
# Deterministic parameter init (mirrors weight_init: orthogonal W, zero bias).
# Head is initialized as a fused (H, 2A) orthogonal matrix (same as the module),
# then split into w_mu / w_logstd and lane-padded with zero columns.
# ---------------------------------------------------------------------------
def _orthogonal(key, rows, cols):
    n = max(rows, cols)
    a = jax.random.normal(key, (n, n), dtype=jnp.float32)
    q, r = jnp.linalg.qr(a)
    q = q * jnp.sign(jnp.diag(r))[None, :]
    return q[:rows, :cols]


def make_actor_params(key, input_dim, hidden_dim, action_dim):
    k1, k2, k3 = jax.random.split(key, 3)
    w1 = _orthogonal(k1, input_dim, hidden_dim)             # (D, H)
    b1 = jnp.zeros((1, hidden_dim), jnp.float32)
    w2 = _orthogonal(k2, hidden_dim, hidden_dim)            # (H, H)
    b2 = jnp.zeros((1, hidden_dim), jnp.float32)
    w3 = _orthogonal(k3, hidden_dim, 2 * action_dim)        # fused head (H, 2A)

    a_pad = _round_up(action_dim, _LANE)
    wmu = jnp.zeros((hidden_dim, a_pad), jnp.float32).at[:, :action_dim].set(
        w3[:, :action_dim])
    wls = jnp.zeros((hidden_dim, a_pad), jnp.float32).at[:, :action_dim].set(
        w3[:, action_dim:])
    bmu = jnp.zeros((1, a_pad), jnp.float32)
    bls = jnp.zeros((1, a_pad), jnp.float32)
    return (w1, b1, w2, b2, wmu, bmu, wls, bls)


if __name__ == "__main__":
    batch = 8
    input_dim = 32
    hidden_dim = 32
    action_dim = 4
    log_std_min, log_std_max = -10.0, 2.0

    root = jax.random.PRNGKey(0)
    k_obs, k_params, k_noise = jax.random.split(root, 3)

    obs = jax.random.normal(k_obs, (batch, input_dim), dtype=jnp.float32)
    params = make_actor_params(k_params, input_dim, hidden_dim, action_dim)
    # torch.randn_like(mu) — drawn outside the kernel for determinism.
    noise = jax.random.normal(k_noise, (batch, action_dim), dtype=jnp.float32)

    # f32 matmuls here for exact checks; pass matmul_dtype=jnp.bfloat16 on v6e/v7x.
    mu, pi, log_pi, log_std = actor_forward(
        obs, params, noise, log_std_min=log_std_min, log_std_max=log_std_max)
    jax.block_until_ready((mu, pi, log_pi, log_std))

    # Sanity checks against a pure-JAX reference (recombine the split head).
    w1, b1, w2, b2, wmu, bmu, wls, bls = params
    w3 = jnp.concatenate([wmu[:, :action_dim], wls[:, :action_dim]], axis=1)
    b3 = jnp.zeros((1, 2 * action_dim), jnp.float32)
    h = jnp.maximum(obs @ w1 + b1, 0.0)
    h = jnp.maximum(h @ w2 + b2, 0.0)
    out = h @ w3 + b3
    mu_r, ls_r = out[:, :action_dim], out[:, action_dim:]
    ls_r = jnp.tanh(ls_r)
    ls_r = log_std_min + 0.5 * (log_std_max - log_std_min) * (ls_r + 1.0)
    pi_r = mu_r + noise * jnp.exp(ls_r)
    lp_r = (jnp.sum(-0.5 * noise ** 2 - ls_r, axis=-1, keepdims=True)
            - 0.5 * jnp.log(2 * jnp.pi) * action_dim)
    mu_t_r, pi_t_r = jnp.tanh(mu_r), jnp.tanh(pi_r)
    lp_r = lp_r - jnp.sum(
        jnp.log(jnp.maximum(1 - pi_t_r ** 2, 0.0) + 1e-6), axis=-1, keepdims=True)

    assert jnp.allclose(mu, mu_t_r, atol=1e-5), "mu mismatch"
    assert jnp.allclose(pi, pi_t_r, atol=1e-5), "pi mismatch"
    assert jnp.allclose(log_pi, lp_r, atol=1e-4), "log_pi mismatch"
    assert jnp.allclose(log_std, ls_r, atol=1e-5), "log_std mismatch"

    print("KERNEL_OK")
</pallas_src>

<mosaic_0001>
module attributes {stable_mosaic.version = 11 : i64} {
  func.func @_actor_kernel(%arg0: i32, %arg1: memref<8x32xf32, #tpu.memory_space<vmem>>, %arg2: memref<8x128xf32, #tpu.memory_space<vmem>>, %arg3: memref<32x32xf32, #tpu.memory_space<vmem>>, %arg4: memref<1x32xf32, #tpu.memory_space<vmem>>, %arg5: memref<32x32xf32, #tpu.memory_space<vmem>>, %arg6: memref<1x32xf32, #tpu.memory_space<vmem>>, %arg7: memref<32x128xf32, #tpu.memory_space<vmem>>, %arg8: memref<1x128xf32, #tpu.memory_space<vmem>>, %arg9: memref<32x128xf32, #tpu.memory_space<vmem>>, %arg10: memref<1x128xf32, #tpu.memory_space<vmem>>, %arg11: memref<8x128xf32, #tpu.memory_space<vmem>>, %arg12: memref<8x128xf32, #tpu.memory_space<vmem>>, %arg13: memref<8x128xf32, #tpu.memory_space<vmem>>, %arg14: memref<8x128xf32, #tpu.memory_space<vmem>>) attributes {dimension_semantics = [#tpu.dimension_semantics<parallel>], iteration_bounds = array<i64: 1>, scalar_prefetch = 0 : i64, scratch_operands = 0 : i64, tpu.core_type = #tpu.core_type<tc>, window_params = [{transform_indices = @transform_0, window_bounds = array<i64: 8, 32>}, {transform_indices = @transform_1, window_bounds = array<i64: 8, 128>}, {pipeline_mode = #tpu.pipeline_mode<synchronous>, transform_indices = @transform_2, window_bounds = array<i64: 32, 32>}, {pipeline_mode = #tpu.pipeline_mode<synchronous>, transform_indices = @transform_3, window_bounds = array<i64: 1, 32>}, {pipeline_mode = #tpu.pipeline_mode<synchronous>, transform_indices = @transform_4, window_bounds = array<i64: 32, 32>}, {pipeline_mode = #tpu.pipeline_mode<synchronous>, transform_indices = @transform_5, window_bounds = array<i64: 1, 32>}, {pipeline_mode = #tpu.pipeline_mode<synchronous>, transform_indices = @transform_6, window_bounds = array<i64: 32, 128>}, {pipeline_mode = #tpu.pipeline_mode<synchronous>, transform_indices = @transform_7, window_bounds = array<i64: 1, 128>}, {pipeline_mode = #tpu.pipeline_mode<synchronous>, transform_indices = @transform_8, window_bounds = array<i64: 32, 128>}, {pipeline_mode = #tpu.pipeline_mode<synchronous>, transform_indices = @transform_9, window_bounds = array<i64: 1, 128>}, {transform_indices = @transform_10, window_bounds = array<i64: 8, 128>}, {transform_indices = @transform_11, window_bounds = array<i64: 8, 128>}, {transform_indices = @transform_12, window_bounds = array<i64: 8, 128>}, {transform_indices = @transform_13, window_bounds = array<i64: 8, 128>}]} {
    %c0 = arith.constant 0 : index
    %c0_0 = arith.constant 0 : index
    %0 = vector.load %arg1[%c0, %c0_0] : memref<8x32xf32, #tpu.memory_space<vmem>>, vector<8x32xf32>
    %c0_1 = arith.constant 0 : index
    %c0_2 = arith.constant 0 : index
    %1 = vector.load %arg3[%c0_1, %c0_2] : memref<32x32xf32, #tpu.memory_space<vmem>>, vector<32x32xf32>
    %cst = arith.constant dense<0.000000e+00> : vector<8x32xf32>
    %2 = tpu.matmul %0, %1, %cst {dimension_numbers = #tpu.dot_dimension_numbers<[1], [0], [0], [1], [0, 0, 1, 1], [], []>} : vector<8x32xf32>, vector<32x32xf32>, vector<8x32xf32> -> vector<8x32xf32>
    %c0_3 = arith.constant 0 : index
    %c0_4 = arith.constant 0 : index
    %3 = vector.load %arg4[%c0_3, %c0_4] : memref<1x32xf32, #tpu.memory_space<vmem>>, vector<1x32xf32>
    %4 = vector.broadcast %3 : vector<1x32xf32> to vector<8x32xf32>
    %5 = arith.addf %2, %4 : vector<8x32xf32>
    %cst_5 = arith.constant 0.000000e+00 : f32
    %6 = vector.broadcast %cst_5 : f32 to vector<8x32xf32>
    %7 = arith.maximumf %5, %6 : vector<8x32xf32>
    %c0_6 = arith.constant 0 : index
    %c0_7 = arith.constant 0 : index
    %8 = vector.load %arg5[%c0_6, %c0_7] : memref<32x32xf32, #tpu.memory_space<vmem>>, vector<32x32xf32>
    %cst_8 = arith.constant dense<0.000000e+00> : vector<8x32xf32>
    %9 = tpu.matmul %7, %8, %cst_8 {dimension_numbers = #tpu.dot_dimension_numbers<[1], [0], [0], [1], [0, 0, 1, 1], [], []>} : vector<8x32xf32>, vector<32x32xf32>, vector<8x32xf32> -> vector<8x32xf32>
    %c0_9 = arith.constant 0 : index
    %c0_10 = arith.constant 0 : index
    %10 = vector.load %arg6[%c0_9, %c0_10] : memref<1x32xf32, #tpu.memory_space<vmem>>, vector<1x32xf32>
    %11 = vector.broadcast %10 : vector<1x32xf32> to vector<8x32xf32>
    %12 = arith.addf %9, %11 : vector<8x32xf32>
    %cst_11 = arith.constant 0.000000e+00 : f32
    %13 = vector.broadcast %cst_11 : f32 to vector<8x32xf32>
    %14 = arith.maximumf %12, %13 : vector<8x32xf32>
    %c0_12 = arith.constant 0 : index
    %c0_13 = arith.constant 0 : index
    %15 = vector.load %arg7[%c0_12, %c0_13] : memref<32x128xf32, #tpu.memory_space<vmem>>, vector<32x128xf32>
    %cst_14 = arith.constant dense<0.000000e+00> : vector<8x128xf32>
    %16 = tpu.matmul %14, %15, %cst_14 {dimension_numbers = #tpu.dot_dimension_numbers<[1], [0], [0], [1], [0, 0, 1, 1], [], []>} : vector<8x32xf32>, vector<32x128xf32>, vector<8x128xf32> -> vector<8x128xf32>
    %c0_15 = arith.constant 0 : index
    %c0_16 = arith.constant 0 : index
    %17 = vector.load %arg8[%c0_15, %c0_16] : memref<1x128xf32, #tpu.memory_space<vmem>>, vector<1x128xf32>
    %18 = vector.broadcast %17 : vector<1x128xf32> to vector<8x128xf32>
    %19 = arith.addf %16, %18 : vector<8x128xf32>
    %c0_17 = arith.constant 0 : index
    %c0_18 = arith.constant 0 : index
    %20 = vector.load %arg9[%c0_17, %c0_18] : memref<32x128xf32, #tpu.memory_space<vmem>>, vector<32x128xf32>
    %cst_19 = arith.constant dense<0.000000e+00> : vector<8x128xf32>
    %21 = tpu.matmul %14, %20, %cst_19 {dimension_numbers = #tpu.dot_dimension_numbers<[1], [0], [0], [1], [0, 0, 1, 1], [], []>} : vector<8x32xf32>, vector<32x128xf32>, vector<8x128xf32> -> vector<8x128xf32>
    %c0_20 = arith.constant 0 : index
    %c0_21 = arith.constant 0 : index
    %22 = vector.load %arg10[%c0_20, %c0_21] : memref<1x128xf32, #tpu.memory_space<vmem>>, vector<1x128xf32>
    %23 = vector.broadcast %22 : vector<1x128xf32> to vector<8x128xf32>
    %24 = arith.addf %21, %23 : vector<8x128xf32>
    %25 = math.tanh %24 : vector<8x128xf32>
    %cst_22 = arith.constant 1.000000e+00 : f32
    %26 = vector.broadcast %cst_22 : f32 to vector<8x128xf32>
    %27 = arith.addf %25, %26 : vector<8x128xf32>
    %cst_23 = arith.constant 6.000000e+00 : f32
    %28 = vector.broadcast %cst_23 : f32 to vector<8x128xf32>
    %29 = arith.mulf %28, %27 : vector<8x128xf32>
    %cst_24 = arith.constant -1.000000e+01 : f32
    %30 = vector.broadcast %cst_24 : f32 to vector<8x128xf32>
    %31 = arith.addf %30, %29 : vector<8x128xf32>
    %32 = math.exp %31 : vector<8x128xf32>
    %c0_25 = arith.constant 0 : index
    %c0_26 = arith.constant 0 : index
    %33 = vector.load %arg2[%c0_25, %c0_26] : memref<8x128xf32, #tpu.memory_space<vmem>>, vector<8x128xf32>
    %34 = arith.mulf %33, %32 : vector<8x128xf32>
    %35 = arith.addf %19, %34 : vector<8x128xf32>
    %36 = tpu.iota {dimensions = array<i32: 1>} : vector<8x128xi32>
    %c4_i32 = arith.constant 4 : i32
    %37 = vector.broadcast %c4_i32 : i32 to vector<8x128xi32>
    %38 = arith.cmpi slt, %36, %37 : vector<8x128xi32>
    %cst_27 = arith.constant -5.000000e-01 : f32
    %39 = vector.broadcast %cst_27 : f32 to vector<8x128xf32>
    %40 = arith.mulf %39, %33 : vector<8x128xf32>
    %41 = arith.mulf %40, %33 : vector<8x128xf32>
    %42 = arith.subf %41, %31 : vector<8x128xf32>
    %cst_28 = arith.constant 0.000000e+00 : f32
    %43 = vector.broadcast %cst_28 : f32 to vector<8x128xf32>
    %44 = arith.select %38, %42, %43 : vector<8x128xi1>, vector<8x128xf32>
    %cst_29 = arith.constant dense<0.000000e+00> : vector<8xf32>
    %45 = vector.multi_reduction <add>, %44, %cst_29 [1] : vector<8x128xf32> to vector<8xf32>
    %46 = vector.shape_cast %45 : vector<8xf32> to vector<8x1xf32>
    %cst_30 = arith.constant 6.28318548 : f32
    %47 = math.log %cst_30 : f32
    %cst_31 = arith.constant 5.000000e-01 : f32
    %48 = arith.mulf %cst_31, %47 : f32
    %cst_32 = arith.constant 4.000000e+00 : f32
    %49 = arith.mulf %48, %cst_32 : f32
    %50 = vector.broadcast %49 : f32 to vector<8x1xf32>
    %51 = arith.subf %46, %50 : vector<8x1xf32>
    %52 = math.tanh %19 : vector<8x128xf32>
    %53 = math.tanh %35 : vector<8x128xf32>
    %54 = arith.mulf %53, %53 : vector<8x128xf32>
    %cst_33 = arith.constant 1.000000e+00 : f32
    %55 = vector.broadcast %cst_33 : f32 to vector<8x128xf32>
    %56 = arith.subf %55, %54 : vector<8x128xf32>
    %cst_34 = arith.constant 0.000000e+00 : f32
    %57 = vector.broadcast %cst_34 : f32 to vector<8x128xf32>
    %58 = arith.maximumf %56, %57 : vector<8x128xf32>
    %cst_35 = arith.constant 9.99999997E-7 : f32
    %59 = vector.broadcast %cst_35 : f32 to vector<8x128xf32>
    %60 = arith.addf %58, %59 : vector<8x128xf32>
    %61 = math.log %60 : vector<8x128xf32>
    %cst_36 = arith.constant 0.000000e+00 : f32
    %62 = vector.broadcast %cst_36 : f32 to vector<8x128xf32>
    %63 = arith.select %38, %61, %62 : vector<8x128xi1>, vector<8x128xf32>
    %cst_37 = arith.constant dense<0.000000e+00> : vector<8xf32>
    %64 = vector.multi_reduction <add>, %63, %cst_37 [1] : vector<8x128xf32> to vector<8xf32>
    %65 = vector.shape_cast %64 : vector<8xf32> to vector<8x1xf32>
    %66 = arith.subf %51, %65 : vector<8x1xf32>
    %c0_38 = arith.constant 0 : index
    %c0_39 = arith.constant 0 : index
    %67 = vector.load %arg11[%c0_38, %c0_39] : memref<8x128xf32, #tpu.memory_space<vmem>>, vector<8x128xf32>
    tpu.vector_store %arg11[%c0_38, %c0_39], %52 {strides = array<i32>} : memref<8x128xf32, #tpu.memory_space<vmem>>, vector<8x128xf32>,
    %c0_40 = arith.constant 0 : index
    %c0_41 = arith.constant 0 : index
    %68 = vector.load %arg12[%c0_40, %c0_41] : memref<8x128xf32, #tpu.memory_space<vmem>>, vector<8x128xf32>
    tpu.vector_store %arg12[%c0_40, %c0_41], %53 {strides = array<i32>} : memref<8x128xf32, #tpu.memory_space<vmem>>, vector<8x128xf32>,
    %69 = vector.shape_cast %66 : vector<8x1xf32> to vector<8x1xf32>
    %70 = vector.broadcast %69 : vector<8x1xf32> to vector<8x128xf32>
    %c0_42 = arith.constant 0 : index
    %c0_43 = arith.constant 0 : index
    %71 = vector.load %arg13[%c0_42, %c0_43] : memref<8x128xf32, #tpu.memory_space<vmem>>, vector<8x128xf32>
    tpu.vector_store %arg13[%c0_42, %c0_43], %70 {strides = array<i32>} : memref<8x128xf32, #tpu.memory_space<vmem>>, vector<8x128xf32>,
    %c0_44 = arith.constant 0 : index
    %c0_45 = arith.constant 0 : index
    %72 = vector.load %arg14[%c0_44, %c0_45] : memref<8x128xf32, #tpu.memory_space<vmem>>, vector<8x128xf32>
    tpu.vector_store %arg14[%c0_44, %c0_45], %31 {strides = array<i32>} : memref<8x128xf32, #tpu.memory_space<vmem>>, vector<8x128xf32>,
    return
  }
  func.func @transform_0(%arg0: i32) -> (i32, i32) {
    %c0_i32 = arith.constant 0 : i32
    %c0_i32_0 = arith.constant 0 : i32
    return %arg0, %c0_i32 : i32, i32
  }
  func.func @transform_1(%arg0: i32) -> (i32, i32) {
    %c0_i32 = arith.constant 0 : i32
    %c0_i32_0 = arith.constant 0 : i32
    return %arg0, %c0_i32 : i32, i32
  }
  func.func @transform_2(%arg0: i32) -> (i32, i32) {
    %c0_i32 = arith.constant 0 : i32
    %c0_i32_0 = arith.constant 0 : i32
    %c0_i32_1 = arith.constant 0 : i32
    return %c0_i32, %c0_i32_0 : i32, i32
  }
  func.func @transform_3(%arg0: i32) -> (i32, i32) {
    %c0_i32 = arith.constant 0 : i32
    %c0_i32_0 = arith.constant 0 : i32
    %c0_i32_1 = arith.constant 0 : i32
    return %c0_i32, %c0_i32_0 : i32, i32
  }
  func.func @transform_4(%arg0: i32) -> (i32, i32) {
    %c0_i32 = arith.constant 0 : i32
    %c0_i32_0 = arith.constant 0 : i32
    %c0_i32_1 = arith.constant 0 : i32
    return %c0_i32, %c0_i32_0 : i32, i32
  }
  func.func @transform_5(%arg0: i32) -> (i32, i32) {
    %c0_i32 = arith.constant 0 : i32
    %c0_i32_0 = arith.constant 0 : i32
    %c0_i32_1 = arith.constant 0 : i32
    return %c0_i32, %c0_i32_0 : i32, i32
  }
  func.func @transform_6(%arg0: i32) -> (i32, i32) {
    %c0_i32 = arith.constant 0 : i32
    %c0_i32_0 = arith.constant 0 : i32
    %c0_i32_1 = arith.constant 0 : i32
    return %c0_i32, %c0_i32_0 : i32, i32
  }
  func.func @transform_7(%arg0: i32) -> (i32, i32) {
    %c0_i32 = arith.constant 0 : i32
    %c0_i32_0 = arith.constant 0 : i32
    %c0_i32_1 = arith.constant 0 : i32
    return %c0_i32, %c0_i32_0 : i32, i32
  }
  func.func @transform_8(%arg0: i32) -> (i32, i32) {
    %c0_i32 = arith.constant 0 : i32
    %c0_i32_0 = arith.constant 0 : i32
    %c0_i32_1 = arith.constant 0 : i32
    return %c0_i32, %c0_i32_0 : i32, i32
  }
  func.func @transform_9(%arg0: i32) -> (i32, i32) {
    %c0_i32 = arith.constant 0 : i32
    %c0_i32_0 = arith.constant 0 : i32
    %c0_i32_1 = arith.constant 0 : i32
    return %c0_i32, %c0_i32_0 : i32, i32
  }
  func.func @transform_10(%arg0: i32) -> (i32, i32) {
    %c0_i32 = arith.constant 0 : i32
    %c0_i32_0 = arith.constant 0 : i32
    return %arg0, %c0_i32 : i32, i32
  }
  func.func @transform_11(%arg0: i32) -> (i32, i32) {
    %c0_i32 = arith.constant 0 : i32
    %c0_i32_0 = arith.constant 0 : i32
    return %arg0, %c0_i32 : i32, i32
  }
  func.func @transform_12(%arg0: i32) -> (i32, i32) {
    %c0_i32 = arith.constant 0 : i32
    %c0_i32_0 = arith.constant 0 : i32
    return %arg0, %c0_i32 : i32, i32
  }
  func.func @transform_13(%arg0: i32) -> (i32, i32) {
    %c0_i32 = arith.constant 0 : i32
    %c0_i32_0 = arith.constant 0 : i32
    return %arg0, %c0_i32 : i32, i32
  }
}

</mosaic_0001>

<llo_original>
// kernel: tpu_custom_call.1
$region0: #{tpu_custom_call.1}
  #allocation0 [shape = 'u32[]', space=smem, size = 0x4, offset = 0x4, fixed_abs, tag = 'smem constant byte address 0x4 - core index']
  #allocation1 [shape = 'u32[144,128]{1,0:T(1,128)}', space=vmem, size = 0x12000, scoped, tag = 'internal scratch']
  %s0 = inlined_call_operand.hbm [shape: f32[8,32], index: 0, kind: input, shape index: {}]
  %s1 = inlined_call_operand.hbm [shape: f32[8,128], index: 1, kind: input, shape index: {}]
  %s2 = inlined_call_operand.hbm [shape: f32[32,32], index: 2, kind: input, shape index: {}]
  %s3 = inlined_call_operand.vmem [shape: f32[1,32], index: 3, kind: input, shape index: {}]
  %s4 = inlined_call_operand.hbm [shape: f32[32,32], index: 4, kind: input, shape index: {}]
  %s5 = inlined_call_operand.vmem [shape: f32[1,32], index: 5, kind: input, shape index: {}]
  %s6 = inlined_call_operand.hbm [shape: f32[32,128], index: 6, kind: input, shape index: {}]
  %s7 = inlined_call_operand.vmem [shape: f32[1,128], index: 7, kind: input, shape index: {}]
  %s8 = inlined_call_operand.hbm [shape: f32[32,128], index: 8, kind: input, shape index: {}]
  %s9 = inlined_call_operand.vmem [shape: f32[1,128], index: 9, kind: input, shape index: {}]
  %s10 = inlined_call_operand.hbm [shape: f32[8,128], index: 10, kind: output, shape index: {0}]
  %s11 = inlined_call_operand.hbm [shape: f32[8,128], index: 11, kind: output, shape index: {1}]
  %s12 = inlined_call_operand.hbm [shape: f32[8,128], index: 12, kind: output, shape index: {2}]
  %s13 = inlined_call_operand.hbm [shape: f32[8,128], index: 13, kind: output, shape index: {3}]
  %14 = xla_tuple %s10, %s11, %s12, %s13
  %s15 = sld [smem:[#allocation0]]
  $region98: #{tpu_custom_call.1} parent=0
    _
  %s17 = ssub.s32 1, %s15
  %s18 = scalar_select 0, %s17, %s15
  $region1: #{tpu_custom_call.1} parent=0
    #allocation2 [shape = 'u8[4096]{0}', space=vmem, size = 0x1000, scoped, tag = 'input window, operand 0, single buffered']
    #allocation3 [shape = 's32[1]{0}', space=sflag, size = 0x4, scoped, tag = 'scoped memory for tpu_custom_call.1']
    #allocation4 [shape = 's32[1]{0}', space=sflag, size = 0x4, scoped, tag = 'scoped memory for tpu_custom_call.1']
    #allocation5 [shape = 'u8[4096]{0}', space=vmem, size = 0x1000, scoped, tag = 'input window, operand 1, single buffered']
    #allocation6 [shape = 's32[1]{0}', space=sflag, size = 0x4, scoped, tag = 'scoped memory for tpu_custom_call.1']
    #allocation7 [shape = 'u8[16384]{0}', space=vmem, size = 0x4000, scoped, tag = 'input window, operand 2, single buffered']
    #allocation8 [shape = 'u8[16384]{0}', space=vmem, size = 0x4000, scoped, tag = 'input window, operand 4, single buffered']
    #allocation9 [shape = 's32[1]{0}', space=sflag, size = 0x4, scoped, tag = 'scoped memory for tpu_custom_call.1']
    #allocation10 [shape = 'u8[16384]{0}', space=vmem, size = 0x4000, scoped, tag = 'input window, operand 6, single buffered']
    #allocation11 [shape = 'u8[16384]{0}', space=vmem, size = 0x4000, scoped, tag = 'input window, operand 8, single buffered']
    #allocation12 [shape = 's32[1]{0}', space=sflag, size = 0x4, scoped, tag = 'scoped memory for tpu_custom_call.1']
    #allocation13 [shape = 'u8[4096]{0}', space=vmem, size = 0x1000, scoped, tag = 'output window, operand 0, single buffered']
    #allocation14 [shape = 'u8[4096]{0}', space=vmem, size = 0x1000, scoped, tag = 'output window, operand 1, single buffered']
    #allocation15 [shape = 's32[1]{0}', space=sflag, size = 0x4, scoped, tag = 'scoped memory for tpu_custom_call.1']
    #allocation16 [shape = 'u8[4096]{0}', space=vmem, size = 0x1000, scoped, tag = 'output window, operand 2, single buffered']
    #allocation17 [shape = 'u8[4096]{0}', space=vmem, size = 0x1000, scoped, tag = 'output window, operand 3, single buffered']
    #allocation18 [shape = 's32[1]{0}', space=sflag, size = 0x4, scoped, tag = 'scoped memory for tpu_custom_call.1']
    %19 = vsyncpa [#allocation3], 0
    %20 = vsyncpa [#allocation6], 0
    %21 = vsyncpa [#allocation9], 0
    %22 = vsyncpa [#allocation12], 0
    %23 = vsyncpa [#allocation4], 0
    %24 = vsyncpa [#allocation15], 0
    %25 = vsyncpa [#allocation18], 0
    // Predicated region
    $region2: #{tpu_custom_call.1} parent=1 // pred_check
      _
    $region3: #{tpu_custom_call.1} parent=1 // pred_check_branch
      %27 = sbr.rel (0) target = $region5
    $region4: #{tpu_custom_call.1} parent=1 // pred_region
      %s29 = ssub.s32 128, 128
      %30 = vsyncadd [#allocation3], %s29
      %s32 = sshll.u32 [#allocation2], 4
      %s33 = int_to_ptr.vmem [resolvable:$true] %s32
      %35 = dma.hbm_to_vmem [thread:$0]  %s0, 128, %s33, [#allocation3]
    $region5: #{tpu_custom_call.1} parent=1 // pred_fallthru
      _
    // Predicated region
    $region6: #{tpu_custom_call.1} parent=1 // pred_check
      _
    $region7: #{tpu_custom_call.1} parent=1 // pred_check_branch
      %37 = sbr.rel (0) target = $region9
    $region8: #{tpu_custom_call.1} parent=1 // pred_region
      %s39 = ssub.s32 128, 128
      %40 = vsyncadd [#allocation6], %s39
      %s42 = sshll.u32 [#allocation5], 4
      %s43 = int_to_ptr.vmem [resolvable:$true] %s42
      %45 = dma.hbm_to_vmem [thread:$0]  %s1, 128, %s43, [#allocation6]
    $region9: #{tpu_custom_call.1} parent=1 // pred_fallthru
      _
    // Predicated region
    $region10: #{tpu_custom_call.1} parent=1 // pred_check
      _
    $region11: #{tpu_custom_call.1} parent=1 // pred_check_branch
      %47 = sbr.rel (0) target = $region13
    $region12: #{tpu_custom_call.1} parent=1 // pred_region
      %s49 = ssub.s32 512, 512
      %50 = vsyncadd [#allocation6], %s49
      %s51 = sshll.u32 [#allocation7], 4
      %s52 = int_to_ptr.vmem [resolvable:$true] %s51
      %57 = dma.hbm_to_vmem [thread:$0]  %s2, 512, %s52, [#allocation6], 128, 128, 8
    $region13: #{tpu_custom_call.1} parent=1 // pred_fallthru
      _
    // Predicated region
    $region14: #{tpu_custom_call.1} parent=1 // pred_check
      _
    $region15: #{tpu_custom_call.1} parent=1 // pred_check_branch
      %59 = sbr.rel (0) target = $region17
    $region16: #{tpu_custom_call.1} parent=1 // pred_region
      _
    $region17: #{tpu_custom_call.1} parent=1 // pred_fallthru
      _
    // Predicated region
    $region18: #{tpu_custom_call.1} parent=1 // pred_check
      _
    $region19: #{tpu_custom_call.1} parent=1 // pred_check_branch
      %61 = sbr.rel (0) target = $region21
    $region20: #{tpu_custom_call.1} parent=1 // pred_region
      %s63 = ssub.s32 512, 512
      %64 = vsyncadd [#allocation9], %s63
      %s65 = sshll.u32 [#allocation8], 4
      %s66 = int_to_ptr.vmem [resolvable:$true] %s65
      %71 = dma.hbm_to_vmem [thread:$0]  %s4, 512, %s66, [#allocation9], 128, 128, 8
    $region21: #{tpu_custom_call.1} parent=1 // pred_fallthru
      _
    // Predicated region
    $region22: #{tpu_custom_call.1} parent=1 // pred_check
      _
    $region23: #{tpu_custom_call.1} parent=1 // pred_check_branch
      %73 = sbr.rel (0) target = $region25
    $region24: #{tpu_custom_call.1} parent=1 // pred_region
      _
    $region25: #{tpu_custom_call.1} parent=1 // pred_fallthru
      _
    // Predicated region
    $region26: #{tpu_custom_call.1} parent=1 // pred_check
      _
    $region27: #{tpu_custom_call.1} parent=1 // pred_check_branch
      %75 = sbr.rel (0) target = $region29
    $region28: #{tpu_custom_call.1} parent=1 // pred_region
      %s77 = ssub.s32 512, 512
      %78 = vsyncadd [#allocation9], %s77
      %s79 = sshll.u32 [#allocation10], 4
      %s80 = int_to_ptr.vmem [resolvable:$true] %s79
      %85 = dma.hbm_to_vmem [thread:$0]  %s6, 512, %s80, [#allocation9], 128, 128, 8
    $region29: #{tpu_custom_call.1} parent=1 // pred_fallthru
      _
    // Predicated region
    $region30: #{tpu_custom_call.1} parent=1 // pred_check
      _
    $region31: #{tpu_custom_call.1} parent=1 // pred_check_branch
      %87 = sbr.rel (0) target = $region33
    $region32: #{tpu_custom_call.1} parent=1 // pred_region
      _
    $region33: #{tpu_custom_call.1} parent=1 // pred_fallthru
      _
    // Predicated region
    $region34: #{tpu_custom_call.1} parent=1 // pred_check
      _
    $region35: #{tpu_custom_call.1} parent=1 // pred_check_branch
      %89 = sbr.rel (0) target = $region37
    $region36: #{tpu_custom_call.1} parent=1 // pred_region
      %s91 = ssub.s32 512, 512
      %92 = vsyncadd [#allocation12], %s91
      %s93 = sshll.u32 [#allocation11], 4
      %s94 = int_to_ptr.vmem [resolvable:$true] %s93
      %99 = dma.hbm_to_vmem [thread:$0]  %s8, 512, %s94, [#allocation12], 128, 128, 8
    $region37: #{tpu_custom_call.1} parent=1 // pred_fallthru
      _
    // Predicated region
    $region38: #{tpu_custom_call.1} parent=1 // pred_check
      _
    $region39: #{tpu_custom_call.1} parent=1 // pred_check_branch
      %101 = sbr.rel (0) target = $region41
    $region40: #{tpu_custom_call.1} parent=1 // pred_region
      _
    $region41: #{tpu_custom_call.1} parent=1 // pred_fallthru
      _
    // Predicated region
    $region42: #{tpu_custom_call.1} parent=1 // pred_check
      _
    $region43: #{tpu_custom_call.1} parent=1 // pred_check_branch
      %103 = sbr.rel (0) target = $region45
    $region44: #{tpu_custom_call.1} parent=1 // pred_region
      %104 = dma.done [#allocation3], 128
    $region45: #{tpu_custom_call.1} parent=1 // pred_fallthru
      _
    // Predicated region
    $region46: #{tpu_custom_call.1} parent=1 // pred_check
      _
    $region47: #{tpu_custom_call.1} parent=1 // pred_check_branch
      %106 = sbr.rel (0) target = $region49
    $region48: #{tpu_custom_call.1} parent=1 // pred_region
      %107 = dma.done [#allocation6], 128
    $region49: #{tpu_custom_call.1} parent=1 // pred_fallthru
      _
    // Predicated region
    $region50: #{tpu_custom_call.1} parent=1 // pred_check
      _
    $region51: #{tpu_custom_call.1} parent=1 // pred_check_branch
      %109 = sbr.rel (0) target = $region53
    $region52: #{tpu_custom_call.1} parent=1 // pred_region
      %110 = dma.done [#allocation6], 512
    $region53: #{tpu_custom_call.1} parent=1 // pred_fallthru
      _
    // Predicated region
    $region54: #{tpu_custom_call.1} parent=1 // pred_check
      _
    $region55: #{tpu_custom_call.1} parent=1 // pred_check_branch
      %112 = sbr.rel (0) target = $region57
    $region56: #{tpu_custom_call.1} parent=1 // pred_region
      %113 = dma.done [#allocation9], 512
    $region57: #{tpu_custom_call.1} parent=1 // pred_fallthru
      _
    // Predicated region
    $region58: #{tpu_custom_call.1} parent=1 // pred_check
      _
    $region59: #{tpu_custom_call.1} parent=1 // pred_check_branch
      %115 = sbr.rel (0) target = $region61
    $region60: #{tpu_custom_call.1} parent=1 // pred_region
      %116 = dma.done [#allocation9], 512
    $region61: #{tpu_custom_call.1} parent=1 // pred_fallthru
      _
    // Predicated region
    $region62: #{tpu_custom_call.1} parent=1 // pred_check
      _
    $region63: #{tpu_custom_call.1} parent=1 // pred_check_branch
      %118 = sbr.rel (0) target = $region65
    $region64: #{tpu_custom_call.1} parent=1 // pred_region
      %119 = dma.done [#allocation12], 512
    $region65: #{tpu_custom_call.1} parent=1 // pred_fallthru
      _
    %v120 = vld [vmem:[#allocation2] sm:$0xff]
    %v121 = vld [vmem:[#allocation7] sm:$0xff]
    %v122 = vld [vmem:[#allocation7 + $0x8] sm:$0xff]
    %v123 = vld [vmem:[#allocation7 + $0x10] sm:$0xff]
    %v124 = vld [vmem:[#allocation7 + $0x18] sm:$0xff]
    %v125 = vld [vmem:[%s3] sm:$0x1]
    %v127 = vlaneseq
    %v128 = vshrl.u32 %v127, 7
    %v129 = vsub.s32 0, %v128
    %v130 = vrot.slane %v125, %v129
    %vm132 = vcmask 261120
    %v134 = vsel %vm132, %v120, 0
    %136 = vmatprep.subr.mxu0 0.0
    %137 = vmatpush1.msra.mxu0 0.0
    %138 = vmatprep.subr.mxu0 0.0
    %139 = vmatpush1.msra.mxu0 0.0
    %140 = vmatprep.subr.mxu0 0.0
    %141 = vmatpush1.msra.mxu0 0.0
    %142 = vmatprep.subr.mxu0 0.0
    %143 = vmatpush1.msra.mxu0 0.0
    %144 = vmatprep.subr.mxu0 0.0
    %145 = vmatpush1.msra.mxu0 0.0
    %146 = vmatprep.subr.mxu0 0.0
    %147 = vmatpush1.msra.mxu0 0.0
    %148 = vmatprep.subr.mxu0 0.0
    %149 = vmatpush1.msra.mxu0 0.0
    %150 = vmatprep.subr.mxu0 0.0
    %151 = vmatpush1.msra.mxu0 0.0
    %152 = vmatprep.subr.mxu0 0.0
    %153 = vmatpush1.msra.mxu0 0.0
    %154 = vmatprep.subr.mxu0 0.0
    %155 = vmatpush1.msra.mxu0 0.0
    %156 = vmatprep.subr.mxu0 0.0
    %157 = vmatpush1.msra.mxu0 0.0
    %158 = vmatprep.subr.mxu0 0.0
    %159 = vmatpush1.msra.mxu0 0.0
    %160 = vmatprep.subr.mxu0 0.0
    %161 = vmatpush1.msra.mxu0 %v124
    %162 = vmatprep.subr.mxu0 0.0
    %163 = vmatpush1.msra.mxu0 %v123
    %164 = vmatprep.subr.mxu0 0.0
    %165 = vmatpush1.msra.mxu0 %v122
    %166 = vmatprep.subr.mxu0 0.0
    %167 = vmatpush1.msra.mxu0 %v121
    %168 = vmatprep.subr.mxu0 0.0
    %169 = vmatpush2.msra.mxu0 0.0
    %170 = vmatprep.subr.mxu0 0.0
    %171 = vmatpush2.msra.mxu0 0.0
    %172 = vmatprep.subr.mxu0 0.0
    %173 = vmatpush2.msra.mxu0 0.0
    %174 = vmatprep.subr.mxu0 0.0
    %175 = vmatpush2.msra.mxu0 0.0
    %176 = vmatprep.subr.mxu0 0.0
    %177 = vmatpush2.msra.mxu0 0.0
    %178 = vmatprep.subr.mxu0 0.0
    %179 = vmatpush2.msra.mxu0 0.0
    %180 = vmatprep.subr.mxu0 0.0
    %181 = vmatpush2.msra.mxu0 0.0
    %182 = vmatprep.subr.mxu0 0.0
    %183 = vmatpush2.msra.mxu0 0.0
    %184 = vmatprep.subr.mxu0 0.0
    %185 = vmatpush2.msra.mxu0 0.0
    %186 = vmatprep.subr.mxu0 0.0
    %187 = vmatpush2.msra.mxu0 0.0
    %188 = vmatprep.subr.mxu0 0.0
    %189 = vmatpush2.msra.mxu0 0.0
    %190 = vmatprep.subr.mxu0 0.0
    %191 = vmatpush2.msra.mxu0 0.0
    %192 = vmatprep.subr.mxu0 0.0
    %193 = vmatpush2.msra.mxu0 0.0
    %194 = vmatprep.subr.mxu0 0.0
    %195 = vmatpush2.msra.mxu0 0.0
    %196 = vmatprep.subr.mxu0 0.0
    %197 = vmatpush2.msra.mxu0 0.0
    %198 = vmatprep.subr.mxu0 0.0
    %199 = vmatpush2.msra.mxu0 0.0
    %200 = vmatprep.mubr.f32.mxu0 0.0
    %201 = vmatmul.mubr.f32.gmra.mxu0 %v134
    %v202 = vpop.f32.mrf.mxu0
    %v203 = vadd.f32 %v130, %v202
    %v204 = vpop.f32.mrf.mxu0
    %205 = vdwg.mxu0
    %v206 = vmax.f32 %v203, 0.0
    %v207 = vld [vmem:[#allocation8] sm:$0xff]
    %v208 = vld [vmem:[#allocation8 + $0x8] sm:$0xff]
    %v209 = vld [vmem:[#allocation8 + $0x10] sm:$0xff]
    %v210 = vld [vmem:[#allocation8 + $0x18] sm:$0xff]
    %v211 = vld [vmem:[%s5] sm:$0x1]
    %v213 = vlaneseq
    %v214 = vshrl.u32 %v213, 7
    %v215 = vsub.s32 0, %v214
    %v216 = vrot.slane %v211, %v215
    %v219 = vsel %vm132, %v206, 0
    %221 = vmatprep.subr.mxu0 0.0
    %222 = vmatpush1.msra.mxu0 0.0
    %223 = vmatprep.subr.mxu0 0.0
    %224 = vmatpush1.msra.mxu0 0.0
    %225 = vmatprep.subr.mxu0 0.0
    %226 = vmatpush1.msra.mxu0 0.0
    %227 = vmatprep.subr.mxu0 0.0
    %228 = vmatpush1.msra.mxu0 0.0
    %229 = vmatprep.subr.mxu0 0.0
    %230 = vmatpush1.msra.mxu0 0.0
    %231 = vmatprep.subr.mxu0 0.0
    %232 = vmatpush1.msra.mxu0 0.0
    %233 = vmatprep.subr.mxu0 0.0
    %234 = vmatpush1.msra.mxu0 0.0
    %235 = vmatprep.subr.mxu0 0.0
    %236 = vmatpush1.msra.mxu0 0.0
    %237 = vmatprep.subr.mxu0 0.0
    %238 = vmatpush1.msra.mxu0 0.0
    %239 = vmatprep.subr.mxu0 0.0
    %240 = vmatpush1.msra.mxu0 0.0
    %241 = vmatprep.subr.mxu0 0.0
    %242 = vmatpush1.msra.mxu0 0.0
    %243 = vmatprep.subr.mxu0 0.0
    %244 = vmatpush1.msra.mxu0 0.0
    %245 = vmatprep.subr.mxu0 0.0
    %246 = vmatpush1.msra.mxu0 %v210
    %247 = vmatprep.subr.mxu0 0.0
    %248 = vmatpush1.msra.mxu0 %v209
    %249 = vmatprep.subr.mxu0 0.0
    %250 = vmatpush1.msra.mxu0 %v208
    %251 = vmatprep.subr.mxu0 0.0
    %252 = vmatpush1.msra.mxu0 %v207
    %253 = vmatprep.subr.mxu0 0.0
    %254 = vmatpush2.msra.mxu0 0.0
    %255 = vmatprep.subr.mxu0 0.0
    %256 = vmatpush2.msra.mxu0 0.0
    %257 = vmatprep.subr.mxu0 0.0
    %258 = vmatpush2.msra.mxu0 0.0
    %259 = vmatprep.subr.mxu0 0.0
    %260 = vmatpush2.msra.mxu0 0.0
    %261 = vmatprep.subr.mxu0 0.0
    %262 = vmatpush2.msra.mxu0 0.0
    %263 = vmatprep.subr.mxu0 0.0
    %264 = vmatpush2.msra.mxu0 0.0
    %265 = vmatprep.subr.mxu0 0.0
    %266 = vmatpush2.msra.mxu0 0.0
    %267 = vmatprep.subr.mxu0 0.0
    %268 = vmatpush2.msra.mxu0 0.0
    %269 = vmatprep.subr.mxu0 0.0
    %270 = vmatpush2.msra.mxu0 0.0
    %271 = vmatprep.subr.mxu0 0.0
    %272 = vmatpush2.msra.mxu0 0.0
    %273 = vmatprep.subr.mxu0 0.0
    %274 = vmatpush2.msra.mxu0 0.0
    %275 = vmatprep.subr.mxu0 0.0
    %276 = vmatpush2.msra.mxu0 0.0
    %277 = vmatprep.subr.mxu0 0.0
    %278 = vmatpush2.msra.mxu0 0.0
    %279 = vmatprep.subr.mxu0 0.0
    %280 = vmatpush2.msra.mxu0 0.0
    %281 = vmatprep.subr.mxu0 0.0
    %282 = vmatpush2.msra.mxu0 0.0
    %283 = vmatprep.subr.mxu0 0.0
    %284 = vmatpush2.msra.mxu0 0.0
    %285 = vmatprep.mubr.f32.mxu0 0.0
    %286 = vmatmul.mubr.f32.gmra.mxu0 %v219
    %v287 = vpop.f32.mrf.mxu0
    %v288 = vadd.f32 %v216, %v287
    %v289 = vpop.f32.mrf.mxu0
    %290 = vdwg.mxu0
    %v291 = vmax.f32 %v288, 0.0
    %v292 = vld [vmem:[#allocation10] sm:$0xff]
    %v293 = vld [vmem:[#allocation10 + $0x8] sm:$0xff]
    %v294 = vld [vmem:[#allocation10 + $0x10] sm:$0xff]
    %v295 = vld [vmem:[#allocation10 + $0x18] sm:$0xff]
    %v296 = vld [vmem:[%s7] sm:$0x1]
    %v298 = vlaneseq
    %v299 = vshrl.u32 %v298, 7
    %v300 = vsub.s32 0, %v299
    %v301 = vrot.slane %v296, %v300
    %v304 = vsel %vm132, %v291, 0
    %306 = vmatprep.subr.mxu0 0.0
    %307 = vmatpush1.msra.mxu0 0.0
    %308 = vmatprep.subr.mxu0 0.0
    %309 = vmatpush1.msra.mxu0 0.0
    %310 = vmatprep.subr.mxu0 0.0
    %311 = vmatpush1.msra.mxu0 0.0
    %312 = vmatprep.subr.mxu0 0.0
    %313 = vmatpush1.msra.mxu0 0.0
    %314 = vmatprep.subr.mxu0 0.0
    %315 = vmatpush1.msra.mxu0 0.0
    %316 = vmatprep.subr.mxu0 0.0
    %317 = vmatpush1.msra.mxu0 0.0
    %318 = vmatprep.subr.mxu0 0.0
    %319 = vmatpush1.msra.mxu0 0.0
    %320 = vmatprep.subr.mxu0 0.0
    %321 = vmatpush1.msra.mxu0 0.0
    %322 = vmatprep.subr.mxu0 0.0
    %323 = vmatpush1.msra.mxu0 0.0
    %324 = vmatprep.subr.mxu0 0.0
    %325 = vmatpush1.msra.mxu0 0.0
    %326 = vmatprep.subr.mxu0 0.0
    %327 = vmatpush1.msra.mxu0 0.0
    %328 = vmatprep.subr.mxu0 0.0
    %329 = vmatpush1.msra.mxu0 0.0
    %330 = vmatprep.subr.mxu0 0.0
    %331 = vmatpush1.msra.mxu0 %v295
    %332 = vmatprep.subr.mxu0 0.0
    %333 = vmatpush1.msra.mxu0 %v294
    %334 = vmatprep.subr.mxu0 0.0
    %335 = vmatpush1.msra.mxu0 %v293
    %336 = vmatprep.subr.mxu0 0.0
    %337 = vmatpush1.msra.mxu0 %v292
    %338 = vmatprep.subr.mxu0 0.0
    %339 = vmatpush2.msra.mxu0 0.0
    %340 = vmatprep.subr.mxu0 0.0
    %341 = vmatpush2.msra.mxu0 0.0
    %342 = vmatprep.subr.mxu0 0.0
    %343 = vmatpush2.msra.mxu0 0.0
    %344 = vmatprep.subr.mxu0 0.0
    %345 = vmatpush2.msra.mxu0 0.0
    %346 = vmatprep.subr.mxu0 0.0
    %347 = vmatpush2.msra.mxu0 0.0
    %348 = vmatprep.subr.mxu0 0.0
    %349 = vmatpush2.msra.mxu0 0.0
    %350 = vmatprep.subr.mxu0 0.0
    %351 = vmatpush2.msra.mxu0 0.0
    %352 = vmatprep.subr.mxu0 0.0
    %353 = vmatpush2.msra.mxu0 0.0
    %354 = vmatprep.subr.mxu0 0.0
    %355 = vmatpush2.msra.mxu0 0.0
    %356 = vmatprep.subr.mxu0 0.0
    %357 = vmatpush2.msra.mxu0 0.0
    %358 = vmatprep.subr.mxu0 0.0
    %359 = vmatpush2.msra.mxu0 0.0
    %360 = vmatprep.subr.mxu0 0.0
    %361 = vmatpush2.msra.mxu0 0.0
    %362 = vmatprep.subr.mxu0 0.0
    %363 = vmatpush2.msra.mxu0 0.0
    %364 = vmatprep.subr.mxu0 0.0
    %365 = vmatpush2.msra.mxu0 0.0
    %366 = vmatprep.subr.mxu0 0.0
    %367 = vmatpush2.msra.mxu0 0.0
    %368 = vmatprep.subr.mxu0 0.0
    %369 = vmatpush2.msra.mxu0 0.0
    %370 = vmatprep.mubr.f32.mxu0 0.0
    %371 = vmatmul.mubr.f32.gmra.mxu0 %v304
    %v372 = vpop.f32.mrf.mxu0
    %v373 = vadd.f32 %v301, %v372
    %v374 = vpop.f32.mrf.mxu0
    %375 = vdwg.mxu0
    %v376 = vld [vmem:[#allocation11] sm:$0xff]
    %v377 = vld [vmem:[#allocation11 + $0x8] sm:$0xff]
    %v378 = vld [vmem:[#allocation11 + $0x10] sm:$0xff]
    %v379 = vld [vmem:[#allocation11 + $0x18] sm:$0xff]
    %v380 = vld [vmem:[%s9] sm:$0x1]
    %v382 = vlaneseq
    %v383 = vshrl.u32 %v382, 7
    %v384 = vsub.s32 0, %v383
    %v385 = vrot.slane %v380, %v384
    %387 = vmatprep.subr.mxu0 0.0
    %388 = vmatpush1.msra.mxu0 0.0
    %389 = vmatprep.subr.mxu0 0.0
    %390 = vmatpush1.msra.mxu0 0.0
    %391 = vmatprep.subr.mxu0 0.0
    %392 = vmatpush1.msra.mxu0 0.0
    %393 = vmatprep.subr.mxu0 0.0
    %394 = vmatpush1.msra.mxu0 0.0
    %395 = vmatprep.subr.mxu0 0.0
    %396 = vmatpush1.msra.mxu0 0.0
    %397 = vmatprep.subr.mxu0 0.0
    %398 = vmatpush1.msra.mxu0 0.0
    %399 = vmatprep.subr.mxu0 0.0
    %400 = vmatpush1.msra.mxu0 0.0
    %401 = vmatprep.subr.mxu0 0.0
    %402 = vmatpush1.msra.mxu0 0.0
    %403 = vmatprep.subr.mxu0 0.0
    %404 = vmatpush1.msra.mxu0 0.0
    %405 = vmatprep.subr.mxu0 0.0
    %406 = vmatpush1.msra.mxu0 0.0
    %407 = vmatprep.subr.mxu0 0.0
    %408 = vmatpush1.msra.mxu0 0.0
    %409 = vmatprep.subr.mxu0 0.0
    %410 = vmatpush1.msra.mxu0 0.0
    %411 = vmatprep.subr.mxu0 0.0
    %412 = vmatpush1.msra.mxu0 %v379
    %413 = vmatprep.subr.mxu0 0.0
    %414 = vmatpush1.msra.mxu0 %v378
    %415 = vmatprep.subr.mxu0 0.0
    %416 = vmatpush1.msra.mxu0 %v377
    %417 = vmatprep.subr.mxu0 0.0
    %418 = vmatpush1.msra.mxu0 %v376
    %419 = vmatprep.subr.mxu0 0.0
    %420 = vmatpush2.msra.mxu0 0.0
    %421 = vmatprep.subr.mxu0 0.0
    %422 = vmatpush2.msra.mxu0 0.0
    %423 = vmatprep.subr.mxu0 0.0
    %424 = vmatpush2.msra.mxu0 0.0
    %425 = vmatprep.subr.mxu0 0.0
    %426 = vmatpush2.msra.mxu0 0.0
    %427 = vmatprep.subr.mxu0 0.0
    %428 = vmatpush2.msra.mxu0 0.0
    %429 = vmatprep.subr.mxu0 0.0
    %430 = vmatpush2.msra.mxu0 0.0
    %431 = vmatprep.subr.mxu0 0.0
    %432 = vmatpush2.msra.mxu0 0.0
    %433 = vmatprep.subr.mxu0 0.0
    %434 = vmatpush2.msra.mxu0 0.0
    %435 = vmatprep.subr.mxu0 0.0
    %436 = vmatpush2.msra.mxu0 0.0
    %437 = vmatprep.subr.mxu0 0.0
    %438 = vmatpush2.msra.mxu0 0.0
    %439 = vmatprep.subr.mxu0 0.0
    %440 = vmatpush2.msra.mxu0 0.0
    %441 = vmatprep.subr.mxu0 0.0
    %442 = vmatpush2.msra.mxu0 0.0
    %443 = vmatprep.subr.mxu0 0.0
    %444 = vmatpush2.msra.mxu0 0.0
    %445 = vmatprep.subr.mxu0 0.0
    %446 = vmatpush2.msra.mxu0 0.0
    %447 = vmatprep.subr.mxu0 0.0
    %448 = vmatpush2.msra.mxu0 0.0
    %449 = vmatprep.subr.mxu0 0.0
    %450 = vmatpush2.msra.mxu0 0.0
    %451 = vmatprep.mubr.f32.mxu0 0.0
    %452 = vmatmul.mubr.f32.gmra.mxu0 %v304
    %v453 = vpop.f32.mrf.mxu0
    %v454 = vadd.f32 %v385, %v453
    %v455 = vpop.f32.mrf.mxu0
    %456 = vdwg.mxu0
    %v457 = vtanh.pop %v454
    %v458 = vadd.f32 %v457, 1.0
    %v459 = vmul.f32 %v458, 6.0
    %v460 = vadd.f32 %v459, -10.0
    %v461 = vmul.f32 %v460, 1.442695
    %v462 = vpow.pop %v461
    %v463 = vld [vmem:[#allocation5] sm:$0xff]
    %v464 = vmul.f32 %v463, %v462
    %v465 = vadd.f32 %v373, %v464
    %v466 = vlaneseq
    %v467 = vand.u32 %v466, 127
    %vm468 = vcmp.lt.s32.totalorder %v467, 4
    %v469 = vmul.f32 %v463, -0.5
    %v470 = vmul.f32 %v469, %v463
    %v471 = vsub.f32 %v470, %v460
    %v472 = vsel %vm468, %v471, 0.0
    %473 = vadd.xlane.f32.xlu0 %v472
    %v474 = vpop.xlane.xlu0 %473
    %v475 = vsub.f32 %v474, 3.675754
    %v476 = vtanh.pop %v373
    %v477 = vtanh.pop %v465
    %v478 = vmul.f32 %v477, %v477
    %v479 = vsub.f32 1.0, %v478
    %v480 = vmax.f32 %v479, 0.0
    %v481 = vadd.f32 %v480, 1e-06
    %v482 = vlog2.pop %v481
    %v483 = vmul.f32 %v482, 0.6931472
    %v484 = vsel %vm468, %v483, 0.0
    %485 = vadd.xlane.f32.xlu0 %v484
    %v486 = vpop.xlane.xlu0 %485
    %v487 = vsub.f32 %v475, %v486
    %488 = vst [vmem:[#allocation13] sm:$0xff] %v476
    %489 = vst [vmem:[#allocation14] sm:$0xff] %v477
    %490 = vst [vmem:[#allocation16] sm:$0xff] %v487
    %491 = vst [vmem:[#allocation17] sm:$0xff] %v460
    // Predicated region
    $region66: #{tpu_custom_call.1} parent=1 // pred_check
      _
    $region67: #{tpu_custom_call.1} parent=1 // pred_check_branch
      %493 = sbr.rel (0) target = $region69
    $region68: #{tpu_custom_call.1} parent=1 // pred_region
      %s495 = ssub.s32 128, 128
      %496 = vsyncadd [#allocation4], %s495
      %s498 = sshll.u32 [#allocation13], 4
      %s499 = int_to_ptr.vmem [resolvable:$true] %s498
      %501 = dma.vmem_to_hbm [thread:$0]  %s499, 128, %s10, [#allocation4]
    $region69: #{tpu_custom_call.1} parent=1 // pred_fallthru
      _
    // Predicated region
    $region70: #{tpu_custom_call.1} parent=1 // pred_check
      _
    $region71: #{tpu_custom_call.1} parent=1 // pred_check_branch
      %503 = sbr.rel (0) target = $region73
    $region72: #{tpu_custom_call.1} parent=1 // pred_region
      %s505 = ssub.s32 128, 128
      %506 = vsyncadd [#allocation15], %s505
      %s508 = sshll.u32 [#allocation14], 4
      %s509 = int_to_ptr.vmem [resolvable:$true] %s508
      %511 = dma.vmem_to_hbm [thread:$0]  %s509, 128, %s11, [#allocation15]
    $region73: #{tpu_custom_call.1} parent=1 // pred_fallthru
      _
    // Predicated region
    $region74: #{tpu_custom_call.1} parent=1 // pred_check
      _
    $region75: #{tpu_custom_call.1} parent=1 // pred_check_branch
      %513 = sbr.rel (0) target = $region77
    $region76: #{tpu_custom_call.1} parent=1 // pred_region
      %s515 = ssub.s32 128, 128
      %516 = vsyncadd [#allocation15], %s515
      %s518 = sshll.u32 [#allocation16], 4
      %s519 = int_to_ptr.vmem [resolvable:$true] %s518
      %521 = dma.vmem_to_hbm [thread:$0]  %s519, 128, %s12, [#allocation15]
    $region77: #{tpu_custom_call.1} parent=1 // pred_fallthru
      _
    // Predicated region
    $region78: #{tpu_custom_call.1} parent=1 // pred_check
      _
    $region79: #{tpu_custom_call.1} parent=1 // pred_check_branch
      %523 = sbr.rel (0) target = $region81
    $region80: #{tpu_custom_call.1} parent=1 // pred_region
      %s525 = ssub.s32 128, 128
      %526 = vsyncadd [#allocation18], %s525
      %s528 = sshll.u32 [#allocation17], 4
      %s529 = int_to_ptr.vmem [resolvable:$true] %s528
      %531 = dma.vmem_to_hbm [thread:$0]  %s529, 128, %s13, [#allocation18]
    $region81: #{tpu_custom_call.1} parent=1 // pred_fallthru
      _
    // Predicated region
    $region82: #{tpu_custom_call.1} parent=1 // pred_check
      _
    $region83: #{tpu_custom_call.1} parent=1 // pred_check_branch
      %533 = sbr.rel (0) target = $region85
    $region84: #{tpu_custom_call.1} parent=1 // pred_region
      %534 = dma.done [#allocation4], 128
    $region85: #{tpu_custom_call.1} parent=1 // pred_fallthru
      _
    // Predicated region
    $region86: #{tpu_custom_call.1} parent=1 // pred_check
      _
    $region87: #{tpu_custom_call.1} parent=1 // pred_check_branch
      %536 = sbr.rel (0) target = $region89
    $region88: #{tpu_custom_call.1} parent=1 // pred_region
      %537 = dma.done [#allocation15], 128
    $region89: #{tpu_custom_call.1} parent=1 // pred_fallthru
      _
    // Predicated region
    $region90: #{tpu_custom_call.1} parent=1 // pred_check
      _
    $region91: #{tpu_custom_call.1} parent=1 // pred_check_branch
      %539 = sbr.rel (0) target = $region93
    $region92: #{tpu_custom_call.1} parent=1 // pred_region
      %540 = dma.done [#allocation15], 128
    $region93: #{tpu_custom_call.1} parent=1 // pred_fallthru
      _
    // Predicated region
    $region94: #{tpu_custom_call.1} parent=1 // pred_check
      _
    $region95: #{tpu_custom_call.1} parent=1 // pred_check_branch
      %542 = sbr.rel (0) target = $region97
    $region96: #{tpu_custom_call.1} parent=1 // pred_region
      %543 = dma.done [#allocation18], 128
    $region97: #{tpu_custom_call.1} parent=1 // pred_fallthru
      _
    %544 = vsyncpa [#allocation3], 1
    %545 = vsyncpa [#allocation6], 1
    %546 = vsyncpa [#allocation9], 1
    %547 = vsyncpa [#allocation12], 1
    %548 = vsyncpa [#allocation4], 1
    %549 = vsyncpa [#allocation15], 1
    %550 = vsyncpa [#allocation18], 1

</llo_original>
